<compile_context>
chip_gen: v5e
topology: v5e:2x2
jax: 0.10.0
libtpu: 0.0.40
codegen_flags: <defaults>
</compile_context>

<pallas_src>
import jax
import jax.numpy as jnp
from jax.experimental import pallas as pl
from jax.experimental.pallas import tpu as pltpu


def attn_pooling_kernel(x_ref, mask_ref, w_int_ref, b_int_ref,
                        w_p_ref, b_p_ref, out_ref):
    # Per grid step (BB batch rows):
    #   x_ref:     (BB, T, H) f32     mask_ref: (BB, 1, T) f32 (0/1)
    #   w_int_ref: (H, D) bf16        b_int_ref: (1, D) f32
    #   w_p_ref:   (1, D) bf16        b_p_ref:   (1, 1) f32
    #   out_ref:   (BB, 1, H) f32
    BB, T, H = x_ref.shape
    D = w_int_ref.shape[1]

    x = x_ref[...]                                    # (BB, T, H) f32
    mask = mask_ref[...]                              # (BB, 1, T) f32

    # bf16 MXU operands (f32 accumulation everywhere via preferred_element_type)
    x2_bf = x.reshape(BB * T, H).astype(jnp.bfloat16)  # flat rows for projection
    x3_bf = x.astype(jnp.bfloat16)                     # batched view for pooling

    # ---- intermediate projector: tanh(x @ W_int + b_int) -> (BB*T, D) ----
    h = jnp.dot(x2_bf, w_int_ref[...],
                preferred_element_type=jnp.float32)   # single big MXU matmul
    h = jnp.tanh(h + b_int_ref[...])                  # (BB*T, D)
    # NOTE: the module's `h * mask` is intentionally skipped: scores are
    # multiplied by the same 0/1 mask below, so masked positions are zeroed
    # either way (bit-identical for a 0/1 mask).
    h3 = h.reshape(BB, T, D).astype(jnp.bfloat16)     # (BB, T, D)

    # ---- projector: scores[b, 0, t] = w_p . h[b, t, :] + b_p -> (BB, 1, T) ----
    w_pb = jnp.broadcast_to(w_p_ref[...].reshape(1, 1, D), (BB, 1, D))
    scores = jnp.einsum('bxd,btd->bxt', w_pb, h3,
                        preferred_element_type=jnp.float32)   # (BB, 1, T)
    scores = scores + b_p_ref[...]                    # + scalar bias

    # ---- masked softmax over T (AllenNLP non-memory-efficient semantics) ----
    v = scores * mask
    v = v - jnp.max(v, axis=-1, keepdims=True)        # softmax-invariant shift
    p = jnp.exp(v)
    p = p * pl.reciprocal(jnp.sum(p, axis=-1, keepdims=True), approx=True)
    p = p * mask
    # The 1e-13 guard keeps fully-masked rows finite (output ~0), matching
    # the PyTorch/AllenNLP behavior.
    p = p * pl.reciprocal(jnp.sum(p, axis=-1, keepdims=True) + 1e-13,
                          approx=True)

    # ---- pooled = attn (BB, 1, T) @ xinit (BB, T, H) on the MXU ----
    pooled = jnp.einsum('bxt,bth->bxh', p.astype(jnp.bfloat16), x3_bf,
                        preferred_element_type=jnp.float32)   # (BB, 1, H)
    out_ref[...] = pooled.astype(out_ref.dtype)


def _choose_batch_block(B, T, H, D, vmem_budget=16 << 20):
    """Largest divisor of B whose double-buffered tiles + intermediates fit."""
    best = 1
    for bb in range(1, B + 1):
        if B % bb:
            continue
        rows = bb * T
        tiles = 2 * bb * (T * H + T + H) * 4           # x + mask + out, 2x-buffered
        interm = rows * (2 * H + 6 * D + 16)           # bf16 x copies, h f32+bf16, scores/p
        if rows <= 4096 and tiles + interm <= vmem_budget:
            best = bb
    return best


def attn_pooling(xinit, xmask, w_int, b_int, w_p, b_p, *, batch_block=None):
    B, T, H = xinit.shape
    D = w_int.shape[1]

    # Host-side prep (free): lane-aligned mask, bf16 MXU weights.
    mask3 = xmask.reshape(B, 1, T).astype(xinit.dtype)      # (B, 1, T)
    w_int_bf = w_int.astype(jnp.bfloat16)
    w_p_bf = w_p.astype(jnp.bfloat16)

    BB = _choose_batch_block(B, T, H, D) if batch_block is None else batch_block
    assert B % BB == 0, "batch_block must divide B"

    # VMEM budget: 2x-buffered per-step tiles + resident weights + intermediates.
    f32 = 4
    tiles = 2 * BB * (T * H + T + H) * f32
    weights = (H * D + D) * 2 + (D + 1) * f32               # bf16 W + f32 biases
    interm = BB * T * (2 * H + 6 * D + 16)
    need = tiles + weights + interm
    vmem_limit = int(min(max(2 * need, 4 << 20), 48 << 20))  # safe on v5e/v6e/v7x

    out = pl.pallas_call(
        attn_pooling_kernel,
        out_shape=jax.ShapeDtypeStruct((B, 1, H), xinit.dtype),
        grid=(B // BB,),
        in_specs=[
            pl.BlockSpec((BB, T, H), lambda b: (b, 0, 0)),   # xinit tile
            pl.BlockSpec((BB, 1, T), lambda b: (b, 0, 0)),   # mask tile
            pl.BlockSpec((H, D), lambda b: (0, 0)),          # w_int (resident)
            pl.BlockSpec((1, D), lambda b: (0, 0)),          # b_int (resident)
            pl.BlockSpec((1, D), lambda b: (0, 0)),          # w_p   (resident)
            pl.BlockSpec((1, 1), lambda b: (0, 0)),          # b_p   (resident)
        ],
        out_specs=pl.BlockSpec((BB, 1, H), lambda b: (b, 0, 0)),
        compiler_params=pltpu.CompilerParams(
            dimension_semantics=("parallel",),   # megacore-shard the batch axis
            vmem_limit_bytes=vmem_limit,
        ),
    )(xinit, mask3, w_int_bf, b_int, w_p_bf, b_p)
    return out[:, 0, :]                                      # (B, H)


def attn_pooling_ref(xinit, xmask, w_int, b_int, w_p, b_p):
    """Pure-JAX f32 reference mirroring the PyTorch forward."""
    h = jnp.tanh(jnp.einsum('bth,hd->btd', xinit, w_int) + b_int[0])
    h = h * xmask[..., None]
    scores = jnp.einsum('btd,d->bt', h, w_p[0]) + b_p[0, 0]
    p = jax.nn.softmax(scores * xmask, axis=-1)
    p = p * xmask
    p = p / (p.sum(-1, keepdims=True) + 1e-13)
    return jnp.einsum('bt,bth->bh', p, xinit)


if __name__ == "__main__":
    B, T, H, D = 2, 8, 32, 16
    key = jax.random.PRNGKey(0)
    k1, k2, k3, k4, k5 = jax.random.split(key, 5)

    xinit = jax.random.normal(k1, (B, T, H), jnp.float32)
    lengths = jnp.array([8, 5], dtype=jnp.int32)
    xmask = (jnp.arange(T)[None, :] < lengths[:, None]).astype(jnp.float32)

    # Deterministic synthetic parameters (FeedForward weights).
    w_int = 0.1 * jax.random.normal(k2, (H, D), jnp.float32)
    b_int = 0.1 * jax.random.normal(k3, (1, D), jnp.float32)
    w_p = 0.1 * jax.random.normal(k4, (1, D), jnp.float32)
    b_p = 0.1 * jax.random.normal(k5, (1, 1), jnp.float32)

    out = attn_pooling(xinit, xmask, w_int, b_int, w_p, b_p)
    jax.block_until_ready(out)

    ref = attn_pooling_ref(xinit, xmask, w_int, b_int, w_p, b_p)
    assert out.shape == (B, H)
    # bf16 MXU operands (with f32 accumulation) loosen the tolerance vs f32.
    assert jnp.allclose(out, ref, atol=2e-2, rtol=2e-2), (out, ref)
    print("KERNEL_OK")
</pallas_src>

<mosaic_0001>
module attributes {stable_mosaic.version = 11 : i64} {
  func.func @attn_pooling_kernel(%arg0: i32, %arg1: memref<2x8x32xf32, #tpu.memory_space<vmem>>, %arg2: memref<2x1x8xf32, #tpu.memory_space<vmem>>, %arg3: memref<32x16xbf16, #tpu.memory_space<vmem>>, %arg4: memref<1x16xf32, #tpu.memory_space<vmem>>, %arg5: memref<1x16xbf16, #tpu.memory_space<vmem>>, %arg6: memref<1x1xf32, #tpu.memory_space<vmem>>, %arg7: memref<2x1x32xf32, #tpu.memory_space<vmem>>) attributes {dimension_semantics = [#tpu.dimension_semantics<parallel>], iteration_bounds = array<i64: 1>, scalar_prefetch = 0 : i64, scratch_operands = 0 : i64, tpu.core_type = #tpu.core_type<tc>, window_params = [{transform_indices = @transform_0, window_bounds = array<i64: 2, 8, 32>}, {transform_indices = @transform_1, window_bounds = array<i64: 2, 1, 8>}, {pipeline_mode = #tpu.pipeline_mode<synchronous>, transform_indices = @transform_2, window_bounds = array<i64: 32, 16>}, {pipeline_mode = #tpu.pipeline_mode<synchronous>, transform_indices = @transform_3, window_bounds = array<i64: 1, 16>}, {pipeline_mode = #tpu.pipeline_mode<synchronous>, transform_indices = @transform_4, window_bounds = array<i64: 1, 16>}, {pipeline_mode = #tpu.pipeline_mode<synchronous>, transform_indices = @transform_5, window_bounds = array<i64: 1, 1>}, {transform_indices = @transform_6, window_bounds = array<i64: 2, 1, 32>}]} {
    %c0 = arith.constant 0 : index
    %c0_0 = arith.constant 0 : index
    %c0_1 = arith.constant 0 : index
    %0 = vector.load %arg1[%c0, %c0_0, %c0_1] : memref<2x8x32xf32, #tpu.memory_space<vmem>>, vector<2x8x32xf32>
    %c0_2 = arith.constant 0 : index
    %c0_3 = arith.constant 0 : index
    %c0_4 = arith.constant 0 : index
    %1 = vector.load %arg2[%c0_2, %c0_3, %c0_4] : memref<2x1x8xf32, #tpu.memory_space<vmem>>, vector<2x1x8xf32>
    %2 = vector.shape_cast %0 : vector<2x8x32xf32> to vector<16x32xf32>
    %3 = arith.truncf %2 : vector<16x32xf32> to vector<16x32xbf16>
    %4 = arith.truncf %0 : vector<2x8x32xf32> to vector<2x8x32xbf16>
    %c0_5 = arith.constant 0 : index
    %c0_6 = arith.constant 0 : index
    %5 = vector.load %arg3[%c0_5, %c0_6] : memref<32x16xbf16, #tpu.memory_space<vmem>>, vector<32x16xbf16>
    %cst = arith.constant dense<0.000000e+00> : vector<16x16xf32>
    %6 = tpu.matmul %3, %5, %cst {dimension_numbers = #tpu.dot_dimension_numbers<[1], [0], [0], [1], [0, 0, 1, 1], [], []>} : vector<16x32xbf16>, vector<32x16xbf16>, vector<16x16xf32> -> vector<16x16xf32>
    %c0_7 = arith.constant 0 : index
    %c0_8 = arith.constant 0 : index
    %7 = vector.load %arg4[%c0_7, %c0_8] : memref<1x16xf32, #tpu.memory_space<vmem>>, vector<1x16xf32>
    %8 = vector.broadcast %7 : vector<1x16xf32> to vector<16x16xf32>
    %9 = arith.addf %6, %8 : vector<16x16xf32>
    %10 = math.tanh %9 : vector<16x16xf32>
    %11 = vector.shape_cast %10 : vector<16x16xf32> to vector<2x8x16xf32>
    %12 = arith.truncf %11 : vector<2x8x16xf32> to vector<2x8x16xbf16>
    %c0_9 = arith.constant 0 : index
    %c0_10 = arith.constant 0 : index
    %13 = vector.load %arg5[%c0_9, %c0_10] : memref<1x16xbf16, #tpu.memory_space<vmem>>, vector<1x16xbf16>
    %14 = vector.shape_cast %13 : vector<1x16xbf16> to vector<1x1x16xbf16>
    %15 = vector.shape_cast %14 : vector<1x1x16xbf16> to vector<1x1x16xbf16>
    %16 = vector.broadcast %15 : vector<1x1x16xbf16> to vector<2x1x16xbf16>
    "tpu.trace_start"() <{level = 10 : i32, message = "bxd,btd->bxt"}> : () -> ()
    %cst_11 = arith.constant dense<0.000000e+00> : vector<2x1x8xf32>
    %17 = tpu.matmul %16, %12, %cst_11 {dimension_numbers = #tpu.dot_dimension_numbers<[2], [2], [1], [1], [0, 0, 0, 1, 1, 1], [0], [0]>} : vector<2x1x16xbf16>, vector<2x8x16xbf16>, vector<2x1x8xf32> -> vector<2x1x8xf32>
    "tpu.trace_stop"() : () -> ()
    %c0_12 = arith.constant 0 : index
    %c0_13 = arith.constant 0 : index
    %18 = vector.load %arg6[%c0_12, %c0_13] : memref<1x1xf32, #tpu.memory_space<vmem>>, vector<1x1xf32>
    %19 = vector.shape_cast %18 : vector<1x1xf32> to vector<1x1x1xf32>
    %20 = vector.broadcast %19 : vector<1x1x1xf32> to vector<2x1x8xf32>
    %21 = arith.addf %17, %20 : vector<2x1x8xf32>
    %22 = arith.mulf %21, %1 : vector<2x1x8xf32>
    %cst_14 = arith.constant dense<0xFF800000> : vector<2x1xf32>
    %23 = vector.multi_reduction <maximumf>, %22, %cst_14 [2] : vector<2x1x8xf32> to vector<2x1xf32>
    %24 = vector.shape_cast %23 : vector<2x1xf32> to vector<2x1x1xf32>
    %25 = vector.broadcast %24 : vector<2x1x1xf32> to vector<2x1x8xf32>
    %26 = arith.subf %22, %25 : vector<2x1x8xf32>
    %27 = math.exp %26 : vector<2x1x8xf32>
    %cst_15 = arith.constant dense<0.000000e+00> : vector<2x1xf32>
    %28 = vector.multi_reduction <add>, %27, %cst_15 [2] : vector<2x1x8xf32> to vector<2x1xf32>
    %29 = vector.shape_cast %28 : vector<2x1xf32> to vector<2x1x1xf32>
    %30 = tpu.reciprocal %29 {approx = true} : vector<2x1x1xf32> -> vector<2x1x1xf32>
    %31 = vector.broadcast %30 : vector<2x1x1xf32> to vector<2x1x8xf32>
    %32 = arith.mulf %27, %31 : vector<2x1x8xf32>
    %33 = arith.mulf %32, %1 : vector<2x1x8xf32>
    %cst_16 = arith.constant dense<0.000000e+00> : vector<2x1xf32>
    %34 = vector.multi_reduction <add>, %33, %cst_16 [2] : vector<2x1x8xf32> to vector<2x1xf32>
    %35 = vector.shape_cast %34 : vector<2x1xf32> to vector<2x1x1xf32>
    %cst_17 = arith.constant 9.99999982E-14 : f32
    %36 = vector.broadcast %cst_17 : f32 to vector<2x1x1xf32>
    %37 = arith.addf %35, %36 : vector<2x1x1xf32>
    %38 = tpu.reciprocal %37 {approx = true} : vector<2x1x1xf32> -> vector<2x1x1xf32>
    %39 = vector.broadcast %38 : vector<2x1x1xf32> to vector<2x1x8xf32>
    %40 = arith.mulf %33, %39 : vector<2x1x8xf32>
    %41 = arith.truncf %40 : vector<2x1x8xf32> to vector<2x1x8xbf16>
    "tpu.trace_start"() <{level = 10 : i32, message = "bxt,bth->bxh"}> : () -> ()
    %cst_18 = arith.constant dense<0.000000e+00> : vector<2x1x32xf32>
    %42 = tpu.matmul %41, %4, %cst_18 {dimension_numbers = #tpu.dot_dimension_numbers<[2], [1], [1], [2], [0, 0, 0, 1, 1, 2], [0], [0]>} : vector<2x1x8xbf16>, vector<2x8x32xbf16>, vector<2x1x32xf32> -> vector<2x1x32xf32>
    "tpu.trace_stop"() : () -> ()
    %c0_19 = arith.constant 0 : index
    %c0_20 = arith.constant 0 : index
    %c0_21 = arith.constant 0 : index
    %43 = vector.load %arg7[%c0_19, %c0_20, %c0_21] : memref<2x1x32xf32, #tpu.memory_space<vmem>>, vector<2x1x32xf32>
    tpu.vector_store %arg7[%c0_19, %c0_20, %c0_21], %42 {strides = array<i32>} : memref<2x1x32xf32, #tpu.memory_space<vmem>>, vector<2x1x32xf32>,
    return
  }
  func.func @transform_0(%arg0: i32) -> (i32, i32, i32) {
    %c0_i32 = arith.constant 0 : i32
    %c0_i32_0 = arith.constant 0 : i32
    %c0_i32_1 = arith.constant 0 : i32
    return %arg0, %c0_i32, %c0_i32_0 : i32, i32, i32
  }
  func.func @transform_1(%arg0: i32) -> (i32, i32, i32) {
    %c0_i32 = arith.constant 0 : i32
    %c0_i32_0 = arith.constant 0 : i32
    %c0_i32_1 = arith.constant 0 : i32
    return %arg0, %c0_i32, %c0_i32_0 : i32, i32, i32
  }
  func.func @transform_2(%arg0: i32) -> (i32, i32) {
    %c0_i32 = arith.constant 0 : i32
    %c0_i32_0 = arith.constant 0 : i32
    %c0_i32_1 = arith.constant 0 : i32
    return %c0_i32, %c0_i32_0 : i32, i32
  }
  func.func @transform_3(%arg0: i32) -> (i32, i32) {
    %c0_i32 = arith.constant 0 : i32
    %c0_i32_0 = arith.constant 0 : i32
    %c0_i32_1 = arith.constant 0 : i32
    return %c0_i32, %c0_i32_0 : i32, i32
  }
  func.func @transform_4(%arg0: i32) -> (i32, i32) {
    %c0_i32 = arith.constant 0 : i32
    %c0_i32_0 = arith.constant 0 : i32
    %c0_i32_1 = arith.constant 0 : i32
    return %c0_i32, %c0_i32_0 : i32, i32
  }
  func.func @transform_5(%arg0: i32) -> (i32, i32) {
    %c0_i32 = arith.constant 0 : i32
    %c0_i32_0 = arith.constant 0 : i32
    %c0_i32_1 = arith.constant 0 : i32
    return %c0_i32, %c0_i32_0 : i32, i32
  }
  func.func @transform_6(%arg0: i32) -> (i32, i32, i32) {
    %c0_i32 = arith.constant 0 : i32
    %c0_i32_0 = arith.constant 0 : i32
    %c0_i32_1 = arith.constant 0 : i32
    return %arg0, %c0_i32, %c0_i32_0 : i32, i32, i32
  }
}

</mosaic_0001>

<llo_original>
// kernel: tpu_custom_call.1
$region0: #{tpu_custom_call.1}
  #allocation0 [shape = 'u32[]', space=smem, size = 0x4, offset = 0x4, fixed_abs, tag = 'smem constant byte address 0x4 - core index']
  #allocation1 [shape = 'u32[72,128]{1,0:T(1,128)}', space=vmem, size = 0x9000, scoped, tag = 'internal scratch']
  #allocation2 [shape = 'f32[1,1]{1,0:T(1,128)S(1)}', space=vmem, size = 0x200, scoped, tag = 'scoped memory for tpu_custom_call.1']
  %s0 = inlined_call_operand.vmem [shape: f32[2,8,32], index: 0, kind: input, shape index: {}]
  %s1 = inlined_call_operand.vmem [shape: f32[2,1,8], index: 1, kind: input, shape index: {}]
  %s2 = inlined_call_operand.vmem [shape: bf16[32,16], index: 2, kind: input, shape index: {}]
  %s3 = inlined_call_operand.vmem [shape: f32[1,16], index: 3, kind: input, shape index: {}]
  %s4 = inlined_call_operand.vmem [shape: bf16[1,16], index: 4, kind: input, shape index: {}]
  %s5 = inlined_call_operand.<no memory space> [shape: f32[1,1], index: 5, kind: input, shape index: {}]
  %s6 = inlined_call_operand.hbm [shape: f32[2,1,32], index: 6, kind: output, shape index: {}]
  %s7 = sld [smem:[#allocation0]]
  $region34: #{tpu_custom_call.1} parent=0
    _
  %s9 = ssub.s32 1, %s7
  %s10 = scalar_select 0, %s9, %s7
  %v11 = vstv %s5
  %12 = vst [vmem:[#allocation2] sm:$0x1] %v11
  $region1: #{tpu_custom_call.1} parent=0
    #allocation3 [shape = 'u8[1024]{0}', space=vmem, size = 0x400, scoped, tag = 'output window, operand 0, single buffered']
    #allocation4 [shape = 's32[1]{0}', space=sflag, size = 0x4, scoped, tag = 'scoped memory for tpu_custom_call.1']
    %13 = vsyncpa [#allocation4], 0
    // Predicated region
    $region2: #{tpu_custom_call.1} parent=1 // pred_check
      _
    $region3: #{tpu_custom_call.1} parent=1 // pred_check_branch
      %15 = sbr.rel (0) target = $region5
    $region4: #{tpu_custom_call.1} parent=1 // pred_region
      _
    $region5: #{tpu_custom_call.1} parent=1 // pred_fallthru
      _
    // Predicated region
    $region6: #{tpu_custom_call.1} parent=1 // pred_check
      _
    $region7: #{tpu_custom_call.1} parent=1 // pred_check_branch
      %17 = sbr.rel (0) target = $region9
    $region8: #{tpu_custom_call.1} parent=1 // pred_region
      _
    $region9: #{tpu_custom_call.1} parent=1 // pred_fallthru
      _
    // Predicated region
    $region10: #{tpu_custom_call.1} parent=1 // pred_check
      _
    $region11: #{tpu_custom_call.1} parent=1 // pred_check_branch
      %19 = sbr.rel (0) target = $region13
    $region12: #{tpu_custom_call.1} parent=1 // pred_region
      _
    $region13: #{tpu_custom_call.1} parent=1 // pred_fallthru
      _
    // Predicated region
    $region14: #{tpu_custom_call.1} parent=1 // pred_check
      _
    $region15: #{tpu_custom_call.1} parent=1 // pred_check_branch
      %21 = sbr.rel (0) target = $region17
    $region16: #{tpu_custom_call.1} parent=1 // pred_region
      _
    $region17: #{tpu_custom_call.1} parent=1 // pred_fallthru
      _
    // Predicated region
    $region18: #{tpu_custom_call.1} parent=1 // pred_check
      _
    $region19: #{tpu_custom_call.1} parent=1 // pred_check_branch
      %23 = sbr.rel (0) target = $region21
    $region20: #{tpu_custom_call.1} parent=1 // pred_region
      _
    $region21: #{tpu_custom_call.1} parent=1 // pred_fallthru
      _
    // Predicated region
    $region22: #{tpu_custom_call.1} parent=1 // pred_check
      _
    $region23: #{tpu_custom_call.1} parent=1 // pred_check_branch
      %25 = sbr.rel (0) target = $region25
    $region24: #{tpu_custom_call.1} parent=1 // pred_region
      _
    $region25: #{tpu_custom_call.1} parent=1 // pred_fallthru
      _
    %v27 = vld [vmem:[%s0] sm:$0xff]
    %v28 = vld [vmem:[%s0 + $0x8] sm:$0xff]
    %v29 = vld [vmem:[%s1] sm:$0x1]
    %v30 = vld [vmem:[%s1 + $0x1] sm:$0x1]
    %v31 = vpack.c.bf16 %v28, %v27
    %v32 = vpack.c.bf16 %v27, %v27
    %v33 = vpack.c.bf16 %v28, %v28
    %v34 = vld [vmem:[%s2] sm:$0xf]
    %v35 = vld [vmem:[%s2 + $0x4] sm:$0xf]
    %v36 = vld [vmem:[%s2 + $0x8] sm:$0xf]
    %v37 = vld [vmem:[%s2 + $0xc] sm:$0xf]
    %v38 = vld [vmem:[%s3] sm:$0x1]
    %v40 = vperm.slane %v38, 0
    %v46 = vunpack.c.l.b16 %v34
    %v47 = vunpack.c.l.b16 %v35
    %v48 = vunpack.c.l.b16 %v36
    %v49 = vunpack.c.l.b16 %v37
    %v50 = vpack.c.b16 %v47, %v46
    %v51 = vpack.c.b16 %v49, %v48
    %vm54 = vcmask 261120
    %v56 = vsel %vm54, %v31, 0
    %58 = vmatpush.bf16.msra.mxu0 0
    %59 = vmatpush.bf16.msra.mxu0 0
    %60 = vmatpush.bf16.msra.mxu0 0
    %61 = vmatpush.bf16.msra.mxu0 0
    %62 = vmatpush.bf16.msra.mxu0 0
    %63 = vmatpush.bf16.msra.mxu0 0
    %64 = vmatpush.bf16.msra.mxu0 %v51
    %65 = vmatpush.bf16.msra.mxu0 %v50
    %66 = vmatmul.bf16.gmra.mxu0 %v56
    %v67 = vpop.f32.mrf.mxu0
    %v68 = vadd.f32 %v40, %v67
    %v69 = vpop.f32.mrf.mxu0
    %v70 = vadd.f32 %v40, %v69
    %71 = vdwg.mxu0
    %v72 = vtanh.pop %v68
    %v73 = vtanh.pop %v70
    %v74 = vpack.c.bf16 %v72, %v72
    %v75 = vpack.c.bf16 %v73, %v73
    %v76 = vld [vmem:[%s4] sm:$0x1]
    %v77 = vld [vmem:[#allocation2] sm:$0x1]
    %79 = vset.pattern.permute.xlu0 0
    %80 = vperm.xlu0 %79, %v77
    %v81 = vpop.permute.xlu0 %80
    %v83 = vperm.slane %v81, 0
    %vm84 = vcmask 130048
    %v86 = vsel %vm84, %v76, 0
    %v89 = vsel %vm84, %v74, 0
    %91 = vmatpush.bf16.xpose.msra.mxu0 0
    %92 = vmatpush.bf16.xpose.msra.mxu0 0
    %93 = vmatpush.bf16.xpose.msra.mxu0 0
    %94 = vmatpush.bf16.xpose.msra.mxu0 0
    %95 = vmatpush.bf16.xpose.msra.mxu0 0
    %96 = vmatpush.bf16.xpose.msra.mxu0 0
    %97 = vmatpush.bf16.xpose.msra.mxu0 0
    %98 = vmatpush.bf16.xpose.msra.mxu0 %v89
    %99 = vmatmul.bf16.gmra.mxu0 %v86
    %v100 = vpop.f32.mrf.mxu0
    %v101 = vadd.f32 %v83, %v100
    %v102 = vpop.f32.mrf.mxu0
    %103 = vdwg.mxu0
    %v105 = vsel %vm84, %v75, 0
    %107 = vmatpush.bf16.xpose.msra.mxu0 0
    %108 = vmatpush.bf16.xpose.msra.mxu0 0
    %109 = vmatpush.bf16.xpose.msra.mxu0 0
    %110 = vmatpush.bf16.xpose.msra.mxu0 0
    %111 = vmatpush.bf16.xpose.msra.mxu0 0
    %112 = vmatpush.bf16.xpose.msra.mxu0 0
    %113 = vmatpush.bf16.xpose.msra.mxu0 0
    %114 = vmatpush.bf16.xpose.msra.mxu0 %v105
    %115 = vmatmul.bf16.gmra.mxu0 %v86
    %v116 = vpop.f32.mrf.mxu0
    %v117 = vadd.f32 %v83, %v116
    %v118 = vpop.f32.mrf.mxu0
    %119 = vdwg.mxu0
    %v120 = vmul.f32 %v101, %v29
    %v121 = vmul.f32 %v117, %v30
    %vm122 = vcmask 57344
    %v123 = vsel %vm122, %v120, -inf
    %124 = vmax.xlane.f32.xlu0 %v123
    %v125 = vpop.xlane.xlu0 %124
    %v126 = vsel %vm122, %v121, -inf
    %127 = vmax.xlane.f32.xlu0 %v126
    %v128 = vpop.xlane.xlu0 %127
    %v129 = vsub.f32 %v120, %v125
    %v130 = vsub.f32 %v121, %v128
    %v131 = vmul.f32 %v129, 1.442695
    %v132 = vpow.pop %v131
    %v133 = vmul.f32 %v130, 1.442695
    %v134 = vpow.pop %v133
    %v135 = vsel %vm122, %v132, 0.0
    %136 = vadd.xlane.f32.xlu0 %v135
    %v137 = vpop.xlane.xlu0 %136
    %v138 = vsel %vm122, %v134, 0.0
    %139 = vadd.xlane.f32.xlu0 %v138
    %v140 = vpop.xlane.xlu0 %139
    %v141 = vrcp.pop %v137
    %v142 = vrcp.pop %v140
    %v143 = vmul.f32 %v132, %v141
    %v144 = vmul.f32 %v134, %v142
    %v145 = vmul.f32 %v143, %v29
    %v146 = vmul.f32 %v144, %v30
    %v147 = vsel %vm122, %v145, 0.0
    %148 = vadd.xlane.f32.xlu0 %v147
    %v149 = vpop.xlane.xlu0 %148
    %v150 = vsel %vm122, %v146, 0.0
    %151 = vadd.xlane.f32.xlu0 %v150
    %v152 = vpop.xlane.xlu0 %151
    %v153 = vadd.f32 %v149, 1e-13
    %v154 = vadd.f32 %v152, 1e-13
    %v155 = vrcp.pop %v153
    %v156 = vrcp.pop %v154
    %v157 = vmul.f32 %v145, %v155
    %v158 = vmul.f32 %v146, %v156
    %v159 = vpack.c.bf16 %v157, %v157
    %v160 = vpack.c.bf16 %v158, %v158
    %vm161 = vcmask 64512
    %v163 = vsel %vm161, %v159, 0
    %vm165 = vcmask 1043456
    %v167 = vsel %vm165, %v32, 0
    %169 = vmatpush.bf16.msra.mxu0 0
    %170 = vmatpush.bf16.msra.mxu0 0
    %171 = vmatpush.bf16.msra.mxu0 0
    %172 = vmatpush.bf16.msra.mxu0 0
    %173 = vmatpush.bf16.msra.mxu0 0
    %174 = vmatpush.bf16.msra.mxu0 0
    %175 = vmatpush.bf16.msra.mxu0 0
    %176 = vmatpush.bf16.msra.mxu0 %v167
    %177 = vmatmul.bf16.gmra.mxu0 %v163
    %v178 = vpop.f32.mrf.mxu0
    %v179 = vadd.f32 0.0, %v178
    %v180 = vpop.f32.mrf.mxu0
    %181 = vdwg.mxu0
    %v183 = vsel %vm161, %v160, 0
    %v186 = vsel %vm165, %v33, 0
    %188 = vmatpush.bf16.msra.mxu0 0
    %189 = vmatpush.bf16.msra.mxu0 0
    %190 = vmatpush.bf16.msra.mxu0 0
    %191 = vmatpush.bf16.msra.mxu0 0
    %192 = vmatpush.bf16.msra.mxu0 0
    %193 = vmatpush.bf16.msra.mxu0 0
    %194 = vmatpush.bf16.msra.mxu0 0
    %195 = vmatpush.bf16.msra.mxu0 %v186
    %196 = vmatmul.bf16.gmra.mxu0 %v183
    %v197 = vpop.f32.mrf.mxu0
    %v198 = vadd.f32 0.0, %v197
    %v199 = vpop.f32.mrf.mxu0
    %200 = vdwg.mxu0
    %vm201 = vcmask 253952
    %202 = vst.msk [vmem:[#allocation3] sm:$0x1] %vm201, %v179
    %203 = vst.msk [vmem:[#allocation3 + $0x1] sm:$0x1] %vm201, %v198
    // Predicated region
    $region26: #{tpu_custom_call.1} parent=1 // pred_check
      _
    $region27: #{tpu_custom_call.1} parent=1 // pred_check_branch
      %205 = sbr.rel (0) target = $region29
    $region28: #{tpu_custom_call.1} parent=1 // pred_region
      %207 = vsyncadd [#allocation4], 0
      %s208 = sshll.u32 [#allocation3], 4
      %s209 = int_to_ptr.vmem [resolvable:$true] %s208
      %s210 = sshll.u32 %s6, 4
      %s211 = int_to_ptr.hbm [resolvable:$true] %s210
      %216 = dma.vmem_to_hbm [thread:$0]  %s209, 32, %s211, [#allocation4], 16, 16, 1
    $region29: #{tpu_custom_call.1} parent=1 // pred_fallthru
      _
    // Predicated region
    $region30: #{tpu_custom_call.1} parent=1 // pred_check
      _
    $region31: #{tpu_custom_call.1} parent=1 // pred_check_branch
      %218 = sbr.rel (0) target = $region33
    $region32: #{tpu_custom_call.1} parent=1 // pred_region
      %220 = dma.done [#allocation4], 32
    $region33: #{tpu_custom_call.1} parent=1 // pred_fallthru
      _
    %221 = vsyncpa [#allocation4], 1

</llo_original>
